<compile_context>
chip_gen: v6e
topology: v6e:2x2x1
jax: 0.10.0
libtpu: 0.0.40
codegen_flags: <defaults>
</compile_context>

<pallas_src>
import functools

import jax
import jax.numpy as jnp
from jax.experimental import pallas as pl
from jax.experimental.pallas import tpu as pltpu

HIDDEN_1 = 256
HIDDEN_2 = 256
LANE = 128      # vreg lane width
SUBLANE = 8     # vreg sublane count (f32)


def _round_up(x, m):
    return ((x + m - 1) // m) * m


def _tpu_vmem_bytes():
    """Physical per-core VMEM capacity; conservative (v7x-sized) fallback."""
    try:
        return int(pltpu.get_tpu_info().vmem_capacity_bytes)
    except Exception:
        return 64 << 20


def _default_block_b(b, dual_core_like):
    """Generation-aware batch tile."""
    b8 = _round_up(b, SUBLANE)
    if dual_core_like:
        # v7x-like: 2 TensorCores split the "parallel" batch axis; keep >= 2
        # (ideally >= 4) grid steps so each core gets pipelined work.
        return 128 if b8 >= 256 else b8
    # single-TC v5e / v6e: biggest tile that still leaves >= 2 grid steps.
    if b8 >= 1024:
        return 512
    if b8 >= 512:
        return 256
    if b8 >= 256:
        return 128
    return b8


def _mlp_fused_kernel(x_ref, w1_ref, b1_ref, w2_ref, b2_ref, w3_ref, b3_ref, o_ref):
    """Single-shot fused 3-layer MLP for one batch tile (w1/w2/w3 VMEM-resident).

    Matmuls run on the MXU in the weights' compute dtype with f32 accumulation;
    the x tile is cast to the compute dtype on the VPU (free under DMA/MXU slack);
    bias add + ReLU stay in f32; intermediates never leave VMEM.
    """
    cdt = w1_ref.dtype
    x = x_ref[...].astype(cdt)                                          # [TB, in_pad]

    h1 = jnp.dot(x, w1_ref[...], preferred_element_type=jnp.float32)   # [TB, H1] f32
    h1 = jnp.maximum(h1 + b1_ref[...], 0.0).astype(cdt)

    h2 = jnp.dot(h1, w2_ref[...], preferred_element_type=jnp.float32)  # [TB, H2] f32
    h2 = jnp.maximum(h2 + b2_ref[...], 0.0).astype(cdt)

    out = jnp.dot(h2, w3_ref[...], preferred_element_type=jnp.float32)  # [TB, out_pad]
    o_ref[...] = (out + b3_ref[...]).astype(o_ref.dtype)


def _mlp_ksplit_kernel(x_ref, w1_ref, b1_ref, w2_ref, b2_ref, w3_ref, b3_ref, o_ref,
                       h1_acc):
    """Layer-1 K-split variant: grid = (batch tiles, K chunks of in_dim).

    Layer 1 accumulates (tb, 256) partial products into an f32 VMEM scratch across
    the inner "arbitrary" K axis; layers 2/3 run once on the final K step.
    """
    k = pl.program_id(1)
    cdt = w1_ref.dtype

    @pl.when(k == 0)
    def _():
        h1_acc[...] = jnp.zeros_like(h1_acc)

    x = x_ref[...].astype(cdt)                                          # [TB, tk]
    h1_acc[...] += jnp.dot(x, w1_ref[...], preferred_element_type=jnp.float32)

    @pl.when(k == pl.num_programs(1) - 1)
    def _():
        h1 = jnp.maximum(h1_acc[...] + b1_ref[...], 0.0).astype(cdt)
        h2 = jnp.dot(h1, w2_ref[...], preferred_element_type=jnp.float32)
        h2 = jnp.maximum(h2 + b2_ref[...], 0.0).astype(cdt)
        out = jnp.dot(h2, w3_ref[...], preferred_element_type=jnp.float32)
        o_ref[...] = (out + b3_ref[...]).astype(o_ref.dtype)


@functools.partial(jax.jit, static_argnames=("block_b", "block_k", "compute_dtype"))
def mlp_forward(x, params, *, block_b=None, block_k=None, compute_dtype=jnp.bfloat16):
    """x: [B, C, H, W] (or already [B, in_dim]); params: dict of weights/biases.

    Note: with compute_dtype=bf16 the input tile is also cast to bf16 before layer 1
    (f32 accumulation); use compute_dtype=jnp.float32 for an exact-precision path.
    """
    b = x.shape[0]
    x2d = x.reshape(b, -1)                       # nn.Flatten (row-major, matches torch)
    in_dim = x2d.shape[1]
    out_dtype = x2d.dtype

    w1, b1 = params["w1"], params["b1"]
    w2, b2 = params["w2"], params["b2"]
    w3, b3 = params["w3"], params["b3"]
    out_dim = w3.shape[1]

    cdt = jnp.dtype(compute_dtype)
    csz = cdt.itemsize
    xsz = jnp.dtype(x2d.dtype).itemsize
    osz = jnp.dtype(out_dtype).itemsize

    # ---- generation-aware limits -------------------------------------------------
    vmem_cap = _tpu_vmem_bytes()
    dual_core_like = vmem_cap <= (96 << 20)      # v7x-like: 64 MiB VMEM, 2 TCs/chip
    vmem_budget = int(0.75 * vmem_cap)           # leave compiler headroom

    # ---- tile choices --------------------------------------------------------------
    if block_b is None:
        tb = _default_block_b(b, dual_core_like)
    else:
        tb = _round_up(int(block_b), SUBLANE)
    tb = min(tb, _round_up(b, SUBLANE))
    nb = pl.cdiv(b, tb)                          # ragged last tile handled by Pallas

    # K-split layer 1 when w1 (x2 for default double-buffering) would blow VMEM.
    in_pad = _round_up(in_dim, LANE)
    w1_resident_2buf = 2 * in_pad * HIDDEN_1 * csz
    ksplit_threshold = min(24 << 20, int(0.35 * vmem_cap))
    use_ksplit = (block_k is not None) or (w1_resident_2buf > ksplit_threshold)
    if use_ksplit:
        tk = _round_up(int(block_k), LANE) if block_k is not None else 512
        tk = min(tk, _round_up(in_dim, LANE))
        in_pad = _round_up(in_dim, tk)           # K reduction must not see garbage
    else:
        tk = in_pad
    out_pad = _round_up(out_dim, LANE)           # lane-dense output slab

    # ---- operand prep (weights cast once; x streamed in its original dtype) --------
    x_p = x2d
    w1c = w1.astype(cdt)
    if in_pad != in_dim:
        # Zero-pad the contraction dim once; zero rows of w1 contribute nothing.
        x_p = jnp.pad(x_p, ((0, 0), (0, in_pad - in_dim)))
        w1c = jnp.pad(w1c, ((0, in_pad - in_dim), (0, 0)))
    w2c = w2.astype(cdt)
    w3c = w3.astype(cdt)
    b3p = b3
    if out_pad != out_dim:
        w3c = jnp.pad(w3c, ((0, 0), (0, out_pad - out_dim)))
        b3p = jnp.pad(b3, ((0, out_pad - out_dim),))
    b1r = b1.astype(jnp.float32).reshape(1, -1)
    b2r = b2.astype(jnp.float32).reshape(1, -1)
    b3r = b3p.astype(jnp.float32).reshape(1, -1)

    # ---- VMEM budget: 2 buffers per pipelined input, incl. constant-index blocks ---
    w1_vmem = 2 * tk * HIDDEN_1 * csz
    w23_vmem = 2 * (HIDDEN_1 * HIDDEN_2 + HIDDEN_2 * out_pad) * csz
    bias_vmem = 2 * (HIDDEN_1 + HIDDEN_2 + out_pad) * 4
    x_vmem = 2 * tb * tk * xsz
    out_vmem = 2 * tb * out_pad * osz
    act_vmem = tb * (2 * HIDDEN_1 + HIDDEN_2 + out_pad) * 4   # acc/scratch/temps (f32)
    vmem_limit = int(1.25 * (w1_vmem + w23_vmem + bias_vmem
                             + x_vmem + out_vmem + act_vmem)) + (4 << 20)
    vmem_limit = min(max(vmem_limit, 32 << 20), vmem_budget)

    flops = 2 * b * (in_pad * HIDDEN_1 + HIDDEN_1 * HIDDEN_2 + HIDDEN_2 * out_pad)
    bytes_accessed = (
        b * in_pad * xsz
        + (in_pad * HIDDEN_1 + HIDDEN_1 * HIDDEN_2 + HIDDEN_2 * out_pad) * csz
        + (HIDDEN_1 + HIDDEN_2 + out_pad) * 4
        + b * out_pad * osz
    )
    cost = pl.CostEstimate(flops=flops, transcendentals=0, bytes_accessed=bytes_accessed)

    # ---- grid spec ------------------------------------------------------------------
    if not use_ksplit:
        grid = (nb,)
        in_specs = [
            pl.BlockSpec((tb, in_pad), lambda i: (i, 0)),             # x tile (pipelined)
            pl.BlockSpec((in_pad, HIDDEN_1), lambda i: (0, 0)),       # w1 (VMEM-resident)
            pl.BlockSpec((1, HIDDEN_1), lambda i: (0, 0)),            # b1
            pl.BlockSpec((HIDDEN_1, HIDDEN_2), lambda i: (0, 0)),     # w2
            pl.BlockSpec((1, HIDDEN_2), lambda i: (0, 0)),            # b2
            pl.BlockSpec((HIDDEN_2, out_pad), lambda i: (0, 0)),      # w3 (lane-padded)
            pl.BlockSpec((1, out_pad), lambda i: (0, 0)),             # b3
        ]
        out_specs = pl.BlockSpec((tb, out_pad), lambda i: (i, 0))
        scratch_shapes = []
        kernel = _mlp_fused_kernel
        dim_sem = ("parallel",)
    else:
        grid = (nb, in_pad // tk)
        in_specs = [
            pl.BlockSpec((tb, tk), lambda i, k: (i, k)),              # x K-chunk
            pl.BlockSpec((tk, HIDDEN_1), lambda i, k: (k, 0)),        # w1 K-chunk
            pl.BlockSpec((1, HIDDEN_1), lambda i, k: (0, 0)),         # b1
            pl.BlockSpec((HIDDEN_1, HIDDEN_2), lambda i, k: (0, 0)),  # w2 (resident)
            pl.BlockSpec((1, HIDDEN_2), lambda i, k: (0, 0)),         # b2
            pl.BlockSpec((HIDDEN_2, out_pad), lambda i, k: (0, 0)),   # w3 (resident)
            pl.BlockSpec((1, out_pad), lambda i, k: (0, 0)),          # b3
        ]
        out_specs = pl.BlockSpec((tb, out_pad), lambda i, k: (i, 0))
        scratch_shapes = [pltpu.VMEM((tb, HIDDEN_1), jnp.float32)]    # layer-1 accumulator
        kernel = _mlp_ksplit_kernel
        dim_sem = ("parallel", "arbitrary")

    out = pl.pallas_call(
        kernel,
        out_shape=jax.ShapeDtypeStruct((b, out_pad), out_dtype),
        grid_spec=pltpu.PrefetchScalarGridSpec(
            num_scalar_prefetch=0,
            grid=grid,
            in_specs=in_specs,
            out_specs=out_specs,
            scratch_shapes=scratch_shapes,
        ),
        compiler_params=pltpu.CompilerParams(
            dimension_semantics=dim_sem,
            vmem_limit_bytes=vmem_limit,
        ),
        cost_estimate=cost,
    )(x_p, w1c, b1r, w2c, b2r, w3c, b3r)

    return out[:, :out_dim]


def init_mlp_params(key, in_dim, out_dim, dtype=jnp.float32):
    """Deterministic init mimicking nn.Linear default: U(-1/sqrt(fan_in), 1/sqrt(fan_in)).

    Weights stored as (in_features, out_features) = transpose of PyTorch layout.
    """
    keys = jax.random.split(key, 6)

    def linear(kw, kb, fan_in, fan_out):
        bound = 1.0 / jnp.sqrt(jnp.asarray(fan_in, dtype))
        w = jax.random.uniform(kw, (fan_in, fan_out), dtype, -bound, bound)
        bias = jax.random.uniform(kb, (fan_out,), dtype, -bound, bound)
        return w, bias

    w1, b1 = linear(keys[0], keys[1], in_dim, HIDDEN_1)
    w2, b2 = linear(keys[2], keys[3], HIDDEN_1, HIDDEN_2)
    w3, b3 = linear(keys[4], keys[5], HIDDEN_2, out_dim)
    return {"w1": w1, "b1": b1, "w2": w2, "b2": b2, "w3": w3, "b3": b3}


def mlp_reference(x, params):
    """Pure-JAX reference for correctness checking."""
    h = x.reshape(x.shape[0], -1)
    h = jnp.maximum(h @ params["w1"] + params["b1"], 0.0)
    h = jnp.maximum(h @ params["w2"] + params["b2"], 0.0)
    return h @ params["w3"] + params["b3"]


if __name__ == "__main__":
    key = jax.random.PRNGKey(0)
    k_x, k_p, k_x2 = jax.random.split(key, 3)

    # Small image-like input: B=8, C=4, H=W=16 -> in_dim = 4*16*16 = 1024
    B, C, H, W = 8, 4, 16, 16
    in_dim = C * H * W
    out_dim = 10

    x = jax.random.normal(k_x, (B, C, H, W), dtype=jnp.float32)
    params = init_mlp_params(k_p, in_dim, out_dim)
    y_ref = mlp_reference(x, params)

    # Exact-precision path (f32 on the MXU) -> tight check vs reference.
    y_f32 = jax.block_until_ready(mlp_forward(x, params, compute_dtype=jnp.float32))
    assert y_f32.shape == (B, out_dim), y_f32.shape
    assert jnp.allclose(y_f32, y_ref, atol=1e-5, rtol=1e-5), "f32 path mismatch"

    # Default fast path (bf16 weights, in-kernel x cast, f32 accumulation) -> loose check.
    y_bf16 = jax.block_until_ready(mlp_forward(x, params))
    assert y_bf16.shape == (B, out_dim), y_bf16.shape
    assert jnp.allclose(y_bf16, y_ref, atol=5e-2, rtol=5e-2), "bf16 path mismatch"

    # Multi-step pipelined grid with a ragged final batch tile (no wrapper-side pad).
    B2 = 300  # 3 tiles of 128; last tile is partial and masked by Pallas
    x2 = jax.random.normal(k_x2, (B2, C, H, W), dtype=jnp.float32)
    y2_ref = mlp_reference(x2, params)
    y2 = jax.block_until_ready(
        mlp_forward(x2, params, block_b=128, compute_dtype=jnp.float32))
    assert y2.shape == (B2, out_dim), y2.shape
    assert jnp.allclose(y2, y2_ref, atol=1e-5, rtol=1e-5), "ragged-tile path mismatch"

    # K-split path (layer 1 accumulated over 4 chunks of in_dim) -- the structural
    # variant auto-selected when w1 is too big to stay VMEM-resident (v7x, 64 MiB).
    y3 = jax.block_until_ready(
        mlp_forward(x2, params, block_b=128, block_k=256, compute_dtype=jnp.float32))
    assert y3.shape == (B2, out_dim), y3.shape
    assert jnp.allclose(y3, y2_ref, atol=1e-4, rtol=1e-4), "k-split path mismatch"

    print("KERNEL_OK")
</pallas_src>

<mosaic_0001>
module attributes {stable_mosaic.version = 11 : i64} {
  func.func @_mlp_fused_kernel(%arg0: i32, %arg1: memref<8x1024xf32, #tpu.memory_space<vmem>>, %arg2: memref<1024x256xf32, #tpu.memory_space<vmem>>, %arg3: memref<1x256xf32, #tpu.memory_space<vmem>>, %arg4: memref<256x256xf32, #tpu.memory_space<vmem>>, %arg5: memref<1x256xf32, #tpu.memory_space<vmem>>, %arg6: memref<256x128xf32, #tpu.memory_space<vmem>>, %arg7: memref<1x128xf32, #tpu.memory_space<vmem>>, %arg8: memref<8x128xf32, #tpu.memory_space<vmem>>) attributes {dimension_semantics = [#tpu.dimension_semantics<parallel>], iteration_bounds = array<i64: 1>, scalar_prefetch = 0 : i64, scratch_operands = 0 : i64, tpu.core_type = #tpu.core_type<tc>, window_params = [{transform_indices = @transform_0, window_bounds = array<i64: 8, 1024>}, {pipeline_mode = #tpu.pipeline_mode<synchronous>, transform_indices = @transform_1, window_bounds = array<i64: 1024, 256>}, {pipeline_mode = #tpu.pipeline_mode<synchronous>, transform_indices = @transform_2, window_bounds = array<i64: 1, 256>}, {pipeline_mode = #tpu.pipeline_mode<synchronous>, transform_indices = @transform_3, window_bounds = array<i64: 256, 256>}, {pipeline_mode = #tpu.pipeline_mode<synchronous>, transform_indices = @transform_4, window_bounds = array<i64: 1, 256>}, {pipeline_mode = #tpu.pipeline_mode<synchronous>, transform_indices = @transform_5, window_bounds = array<i64: 256, 128>}, {pipeline_mode = #tpu.pipeline_mode<synchronous>, transform_indices = @transform_6, window_bounds = array<i64: 1, 128>}, {transform_indices = @transform_7, window_bounds = array<i64: 8, 128>}]} {
    %c0 = arith.constant 0 : index
    %c0_0 = arith.constant 0 : index
    %0 = vector.load %arg1[%c0, %c0_0] : memref<8x1024xf32, #tpu.memory_space<vmem>>, vector<8x1024xf32>
    %c0_1 = arith.constant 0 : index
    %c0_2 = arith.constant 0 : index
    %1 = vector.load %arg2[%c0_1, %c0_2] : memref<1024x256xf32, #tpu.memory_space<vmem>>, vector<1024x256xf32>
    %cst = arith.constant dense<0.000000e+00> : vector<8x256xf32>
    %2 = tpu.matmul %0, %1, %cst {dimension_numbers = #tpu.dot_dimension_numbers<[1], [0], [0], [1], [0, 0, 1, 1], [], []>} : vector<8x1024xf32>, vector<1024x256xf32>, vector<8x256xf32> -> vector<8x256xf32>
    %c0_3 = arith.constant 0 : index
    %c0_4 = arith.constant 0 : index
    %3 = vector.load %arg3[%c0_3, %c0_4] : memref<1x256xf32, #tpu.memory_space<vmem>>, vector<1x256xf32>
    %4 = vector.broadcast %3 : vector<1x256xf32> to vector<8x256xf32>
    %5 = arith.addf %2, %4 : vector<8x256xf32>
    %cst_5 = arith.constant 0.000000e+00 : f32
    %6 = vector.broadcast %cst_5 : f32 to vector<8x256xf32>
    %7 = arith.maximumf %5, %6 : vector<8x256xf32>
    %c0_6 = arith.constant 0 : index
    %c0_7 = arith.constant 0 : index
    %8 = vector.load %arg4[%c0_6, %c0_7] : memref<256x256xf32, #tpu.memory_space<vmem>>, vector<256x256xf32>
    %cst_8 = arith.constant dense<0.000000e+00> : vector<8x256xf32>
    %9 = tpu.matmul %7, %8, %cst_8 {dimension_numbers = #tpu.dot_dimension_numbers<[1], [0], [0], [1], [0, 0, 1, 1], [], []>} : vector<8x256xf32>, vector<256x256xf32>, vector<8x256xf32> -> vector<8x256xf32>
    %c0_9 = arith.constant 0 : index
    %c0_10 = arith.constant 0 : index
    %10 = vector.load %arg5[%c0_9, %c0_10] : memref<1x256xf32, #tpu.memory_space<vmem>>, vector<1x256xf32>
    %11 = vector.broadcast %10 : vector<1x256xf32> to vector<8x256xf32>
    %12 = arith.addf %9, %11 : vector<8x256xf32>
    %cst_11 = arith.constant 0.000000e+00 : f32
    %13 = vector.broadcast %cst_11 : f32 to vector<8x256xf32>
    %14 = arith.maximumf %12, %13 : vector<8x256xf32>
    %c0_12 = arith.constant 0 : index
    %c0_13 = arith.constant 0 : index
    %15 = vector.load %arg6[%c0_12, %c0_13] : memref<256x128xf32, #tpu.memory_space<vmem>>, vector<256x128xf32>
    %cst_14 = arith.constant dense<0.000000e+00> : vector<8x128xf32>
    %16 = tpu.matmul %14, %15, %cst_14 {dimension_numbers = #tpu.dot_dimension_numbers<[1], [0], [0], [1], [0, 0, 1, 1], [], []>} : vector<8x256xf32>, vector<256x128xf32>, vector<8x128xf32> -> vector<8x128xf32>
    %c0_15 = arith.constant 0 : index
    %c0_16 = arith.constant 0 : index
    %17 = vector.load %arg7[%c0_15, %c0_16] : memref<1x128xf32, #tpu.memory_space<vmem>>, vector<1x128xf32>
    %18 = vector.broadcast %17 : vector<1x128xf32> to vector<8x128xf32>
    %19 = arith.addf %16, %18 : vector<8x128xf32>
    %c0_17 = arith.constant 0 : index
    %c0_18 = arith.constant 0 : index
    %20 = vector.load %arg8[%c0_17, %c0_18] : memref<8x128xf32, #tpu.memory_space<vmem>>, vector<8x128xf32>
    tpu.vector_store %arg8[%c0_17, %c0_18], %19 {strides = array<i32>} : memref<8x128xf32, #tpu.memory_space<vmem>>, vector<8x128xf32>,
    return
  }
  func.func @transform_0(%arg0: i32) -> (i32, i32) {
    %c0_i32 = arith.constant 0 : i32
    %c0_i32_0 = arith.constant 0 : i32
    return %arg0, %c0_i32 : i32, i32
  }
  func.func @transform_1(%arg0: i32) -> (i32, i32) {
    %c0_i32 = arith.constant 0 : i32
    %c0_i32_0 = arith.constant 0 : i32
    %c0_i32_1 = arith.constant 0 : i32
    return %c0_i32, %c0_i32_0 : i32, i32
  }
  func.func @transform_2(%arg0: i32) -> (i32, i32) {
    %c0_i32 = arith.constant 0 : i32
    %c0_i32_0 = arith.constant 0 : i32
    %c0_i32_1 = arith.constant 0 : i32
    return %c0_i32, %c0_i32_0 : i32, i32
  }
  func.func @transform_3(%arg0: i32) -> (i32, i32) {
    %c0_i32 = arith.constant 0 : i32
    %c0_i32_0 = arith.constant 0 : i32
    %c0_i32_1 = arith.constant 0 : i32
    return %c0_i32, %c0_i32_0 : i32, i32
  }
  func.func @transform_4(%arg0: i32) -> (i32, i32) {
    %c0_i32 = arith.constant 0 : i32
    %c0_i32_0 = arith.constant 0 : i32
    %c0_i32_1 = arith.constant 0 : i32
    return %c0_i32, %c0_i32_0 : i32, i32
  }
  func.func @transform_5(%arg0: i32) -> (i32, i32) {
    %c0_i32 = arith.constant 0 : i32
    %c0_i32_0 = arith.constant 0 : i32
    %c0_i32_1 = arith.constant 0 : i32
    return %c0_i32, %c0_i32_0 : i32, i32
  }
  func.func @transform_6(%arg0: i32) -> (i32, i32) {
    %c0_i32 = arith.constant 0 : i32
    %c0_i32_0 = arith.constant 0 : i32
    %c0_i32_1 = arith.constant 0 : i32
    return %c0_i32, %c0_i32_0 : i32, i32
  }
  func.func @transform_7(%arg0: i32) -> (i32, i32) {
    %c0_i32 = arith.constant 0 : i32
    %c0_i32_0 = arith.constant 0 : i32
    return %arg0, %c0_i32 : i32, i32
  }
}

</mosaic_0001>

<llo_original>
// kernel: mlp_forward.1
$region0: #{mlp_forward.1}
  #allocation0 [shape = 'u32[]', space=smem, size = 0x4, offset = 0x4, fixed_abs, tag = 'smem constant byte address 0x4 - core index']
  #allocation1 [shape = 'u32[144,128]{1,0:T(1,128)}', space=vmem, size = 0x12000, scoped, tag = 'internal scratch']
  %s0 = inlined_call_operand.vmem [shape: f32[8,1024], index: 0, kind: input, shape index: {}]
  %s1 = inlined_call_operand.hbm [shape: f32[1024,256], index: 1, kind: input, shape index: {}]
  %s2 = inlined_call_operand.vmem [shape: f32[1,256], index: 2, kind: input, shape index: {}]
  %s3 = inlined_call_operand.vmem [shape: f32[256,256], index: 3, kind: input, shape index: {}]
  %s4 = inlined_call_operand.vmem [shape: f32[1,256], index: 4, kind: input, shape index: {}]
  %s5 = inlined_call_operand.vmem [shape: f32[256,128], index: 5, kind: input, shape index: {}]
  %s6 = inlined_call_operand.vmem [shape: f32[1,128], index: 6, kind: input, shape index: {}]
  %s7 = inlined_call_operand.hbm [shape: f32[8,128], index: 7, kind: output, shape index: {}]
  %s8 = sld [smem:[#allocation0]]
  $region42: #{mlp_forward.1} parent=0
    _
  %s10 = ssub.s32 1, %s8
  %s11 = scalar_select 0, %s10, %s8
  $region1: #{mlp_forward.1} parent=0
    #allocation2 [shape = 'u8[1048576]{0}', space=vmem, size = 0x100000, scoped, tag = 'input window, operand 1, single buffered']
    #allocation3 [shape = 's32[1]{0}', space=sflag, size = 0x4, scoped, tag = 'scoped memory for mlp_forward.1']
    #allocation4 [shape = 's32[1]{0}', space=sflag, size = 0x4, scoped, tag = 'scoped memory for mlp_forward.1']
    #allocation5 [shape = 'u8[4096]{0}', space=vmem, size = 0x1000, scoped, tag = 'output window, operand 0, single buffered']
    %12 = vsyncpa [#allocation3], 0
    %13 = vsyncpa [#allocation4], 0
    // Predicated region
    $region2: #{mlp_forward.1} parent=1 // pred_check
      _
    $region3: #{mlp_forward.1} parent=1 // pred_check_branch
      %15 = sbr.rel (0) target = $region5
    $region4: #{mlp_forward.1} parent=1 // pred_region
      _
    $region5: #{mlp_forward.1} parent=1 // pred_fallthru
      _
    // Predicated region
    $region6: #{mlp_forward.1} parent=1 // pred_check
      _
    $region7: #{mlp_forward.1} parent=1 // pred_check_branch
      %17 = sbr.rel (0) target = $region9
    $region8: #{mlp_forward.1} parent=1 // pred_region
      %s19 = ssub.s32 32768, 32768
      %20 = vsyncadd [#allocation3], %s19
      %s21 = sshll.u32 [#allocation2], 4
      %s22 = int_to_ptr.vmem [resolvable:$true] %s21
      %27 = dma.hbm_to_vmem [thread:$0]  %s1, 32768, %s22, [#allocation3], 256, 256, 16
    $region9: #{mlp_forward.1} parent=1 // pred_fallthru
      _
    // Predicated region
    $region10: #{mlp_forward.1} parent=1 // pred_check
      _
    $region11: #{mlp_forward.1} parent=1 // pred_check_branch
      %29 = sbr.rel (0) target = $region13
    $region12: #{mlp_forward.1} parent=1 // pred_region
      _
    $region13: #{mlp_forward.1} parent=1 // pred_fallthru
      _
    // Predicated region
    $region14: #{mlp_forward.1} parent=1 // pred_check
      _
    $region15: #{mlp_forward.1} parent=1 // pred_check_branch
      %31 = sbr.rel (0) target = $region17
    $region16: #{mlp_forward.1} parent=1 // pred_region
      _
    $region17: #{mlp_forward.1} parent=1 // pred_fallthru
      _
    // Predicated region
    $region18: #{mlp_forward.1} parent=1 // pred_check
      _
    $region19: #{mlp_forward.1} parent=1 // pred_check_branch
      %33 = sbr.rel (0) target = $region21
    $region20: #{mlp_forward.1} parent=1 // pred_region
      _
    $region21: #{mlp_forward.1} parent=1 // pred_fallthru
      _
    // Predicated region
    $region22: #{mlp_forward.1} parent=1 // pred_check
      _
    $region23: #{mlp_forward.1} parent=1 // pred_check_branch
      %35 = sbr.rel (0) target = $region25
    $region24: #{mlp_forward.1} parent=1 // pred_region
      _
    $region25: #{mlp_forward.1} parent=1 // pred_fallthru
      _
    // Predicated region
    $region26: #{mlp_forward.1} parent=1 // pred_check
      _
    $region27: #{mlp_forward.1} parent=1 // pred_check_branch
      %37 = sbr.rel (0) target = $region29
    $region28: #{mlp_forward.1} parent=1 // pred_region
      _
    $region29: #{mlp_forward.1} parent=1 // pred_fallthru
      _
    // Predicated region
    $region30: #{mlp_forward.1} parent=1 // pred_check
      _
    $region31: #{mlp_forward.1} parent=1 // pred_check_branch
      %39 = sbr.rel (0) target = $region33
    $region32: #{mlp_forward.1} parent=1 // pred_region
      %40 = dma.done [#allocation3], 32768
    $region33: #{mlp_forward.1} parent=1 // pred_fallthru
      _
    %v41 = vld [vmem:[%s0] sm:$0xff]
    %v42 = vld [vmem:[%s0 + $0x8] sm:$0xff]
    %v43 = vld [vmem:[%s0 + $0x10] sm:$0xff]
    %v44 = vld [vmem:[%s0 + $0x18] sm:$0xff]
    %v45 = vld [vmem:[%s0 + $0x20] sm:$0xff]
    %v46 = vld [vmem:[%s0 + $0x28] sm:$0xff]
    %v47 = vld [vmem:[%s0 + $0x30] sm:$0xff]
    %v48 = vld [vmem:[%s0 + $0x38] sm:$0xff]
    %v49 = vld [vmem:[#allocation2] sm:$0xff]
    %v50 = vld [vmem:[#allocation2 + $0x8] sm:$0xff]
    %v51 = vld [vmem:[#allocation2 + $0x10] sm:$0xff]
    %v52 = vld [vmem:[#allocation2 + $0x18] sm:$0xff]
    %v53 = vld [vmem:[#allocation2 + $0x20] sm:$0xff]
    %v54 = vld [vmem:[#allocation2 + $0x28] sm:$0xff]
    %v55 = vld [vmem:[#allocation2 + $0x30] sm:$0xff]
    %v56 = vld [vmem:[#allocation2 + $0x38] sm:$0xff]
    %v57 = vld [vmem:[#allocation2 + $0x40] sm:$0xff]
    %v58 = vld [vmem:[#allocation2 + $0x48] sm:$0xff]
    %v59 = vld [vmem:[#allocation2 + $0x50] sm:$0xff]
    %v60 = vld [vmem:[#allocation2 + $0x58] sm:$0xff]
    %v61 = vld [vmem:[#allocation2 + $0x60] sm:$0xff]
    %v62 = vld [vmem:[#allocation2 + $0x68] sm:$0xff]
    %v63 = vld [vmem:[#allocation2 + $0x70] sm:$0xff]
    %v64 = vld [vmem:[#allocation2 + $0x78] sm:$0xff]
    %v65 = vld [vmem:[#allocation2 + $0x80] sm:$0xff]
    %v66 = vld [vmem:[#allocation2 + $0x88] sm:$0xff]
    %v67 = vld [vmem:[#allocation2 + $0x90] sm:$0xff]
    %v68 = vld [vmem:[#allocation2 + $0x98] sm:$0xff]
    %v69 = vld [vmem:[#allocation2 + $0xa0] sm:$0xff]
    %v70 = vld [vmem:[#allocation2 + $0xa8] sm:$0xff]
    %v71 = vld [vmem:[#allocation2 + $0xb0] sm:$0xff]
    %v72 = vld [vmem:[#allocation2 + $0xb8] sm:$0xff]
    %v73 = vld [vmem:[#allocation2 + $0xc0] sm:$0xff]
    %v74 = vld [vmem:[#allocation2 + $0xc8] sm:$0xff]
    %v75 = vld [vmem:[#allocation2 + $0xd0] sm:$0xff]
    %v76 = vld [vmem:[#allocation2 + $0xd8] sm:$0xff]
    %v77 = vld [vmem:[#allocation2 + $0xe0] sm:$0xff]
    %v78 = vld [vmem:[#allocation2 + $0xe8] sm:$0xff]
    %v79 = vld [vmem:[#allocation2 + $0xf0] sm:$0xff]
    %v80 = vld [vmem:[#allocation2 + $0xf8] sm:$0xff]
    %v81 = vld [vmem:[#allocation2 + $0x100] sm:$0xff]
    %v82 = vld [vmem:[#allocation2 + $0x108] sm:$0xff]
    %v83 = vld [vmem:[#allocation2 + $0x110] sm:$0xff]
    %v84 = vld [vmem:[#allocation2 + $0x118] sm:$0xff]
    %v85 = vld [vmem:[#allocation2 + $0x120] sm:$0xff]
    %v86 = vld [vmem:[#allocation2 + $0x128] sm:$0xff]
    %v87 = vld [vmem:[#allocation2 + $0x130] sm:$0xff]
    %v88 = vld [vmem:[#allocation2 + $0x138] sm:$0xff]
    %v89 = vld [vmem:[#allocation2 + $0x140] sm:$0xff]
    %v90 = vld [vmem:[#allocation2 + $0x148] sm:$0xff]
    %v91 = vld [vmem:[#allocation2 + $0x150] sm:$0xff]
    %v92 = vld [vmem:[#allocation2 + $0x158] sm:$0xff]
    %v93 = vld [vmem:[#allocation2 + $0x160] sm:$0xff]
    %v94 = vld [vmem:[#allocation2 + $0x168] sm:$0xff]
    %v95 = vld [vmem:[#allocation2 + $0x170] sm:$0xff]
    %v96 = vld [vmem:[#allocation2 + $0x178] sm:$0xff]
    %v97 = vld [vmem:[#allocation2 + $0x180] sm:$0xff]
    %v98 = vld [vmem:[#allocation2 + $0x188] sm:$0xff]
    %v99 = vld [vmem:[#allocation2 + $0x190] sm:$0xff]
    %v100 = vld [vmem:[#allocation2 + $0x198] sm:$0xff]
    %v101 = vld [vmem:[#allocation2 + $0x1a0] sm:$0xff]
    %v102 = vld [vmem:[#allocation2 + $0x1a8] sm:$0xff]
    %v103 = vld [vmem:[#allocation2 + $0x1b0] sm:$0xff]
    %v104 = vld [vmem:[#allocation2 + $0x1b8] sm:$0xff]
    %v105 = vld [vmem:[#allocation2 + $0x1c0] sm:$0xff]
    %v106 = vld [vmem:[#allocation2 + $0x1c8] sm:$0xff]
    %v107 = vld [vmem:[#allocation2 + $0x1d0] sm:$0xff]
    %v108 = vld [vmem:[#allocation2 + $0x1d8] sm:$0xff]
    %v109 = vld [vmem:[#allocation2 + $0x1e0] sm:$0xff]
    %v110 = vld [vmem:[#allocation2 + $0x1e8] sm:$0xff]
    %v111 = vld [vmem:[#allocation2 + $0x1f0] sm:$0xff]
    %v112 = vld [vmem:[#allocation2 + $0x1f8] sm:$0xff]
    %v113 = vld [vmem:[#allocation2 + $0x200] sm:$0xff]
    %v114 = vld [vmem:[#allocation2 + $0x208] sm:$0xff]
    %v115 = vld [vmem:[#allocation2 + $0x210] sm:$0xff]
    %v116 = vld [vmem:[#allocation2 + $0x218] sm:$0xff]
    %v117 = vld [vmem:[#allocation2 + $0x220] sm:$0xff]
    %v118 = vld [vmem:[#allocation2 + $0x228] sm:$0xff]
    %v119 = vld [vmem:[#allocation2 + $0x230] sm:$0xff]
    %v120 = vld [vmem:[#allocation2 + $0x238] sm:$0xff]
    %v121 = vld [vmem:[#allocation2 + $0x240] sm:$0xff]
    %v122 = vld [vmem:[#allocation2 + $0x248] sm:$0xff]
    %v123 = vld [vmem:[#allocation2 + $0x250] sm:$0xff]
    %v124 = vld [vmem:[#allocation2 + $0x258] sm:$0xff]
    %v125 = vld [vmem:[#allocation2 + $0x260] sm:$0xff]
    %v126 = vld [vmem:[#allocation2 + $0x268] sm:$0xff]
    %v127 = vld [vmem:[#allocation2 + $0x270] sm:$0xff]
    %v128 = vld [vmem:[#allocation2 + $0x278] sm:$0xff]
    %v129 = vld [vmem:[#allocation2 + $0x280] sm:$0xff]
    %v130 = vld [vmem:[#allocation2 + $0x288] sm:$0xff]
    %v131 = vld [vmem:[#allocation2 + $0x290] sm:$0xff]
    %v132 = vld [vmem:[#allocation2 + $0x298] sm:$0xff]
    %v133 = vld [vmem:[#allocation2 + $0x2a0] sm:$0xff]
    %v134 = vld [vmem:[#allocation2 + $0x2a8] sm:$0xff]
    %v135 = vld [vmem:[#allocation2 + $0x2b0] sm:$0xff]
    %v136 = vld [vmem:[#allocation2 + $0x2b8] sm:$0xff]
    %v137 = vld [vmem:[#allocation2 + $0x2c0] sm:$0xff]
    %v138 = vld [vmem:[#allocation2 + $0x2c8] sm:$0xff]
    %v139 = vld [vmem:[#allocation2 + $0x2d0] sm:$0xff]
    %v140 = vld [vmem:[#allocation2 + $0x2d8] sm:$0xff]
    %v141 = vld [vmem:[#allocation2 + $0x2e0] sm:$0xff]
    %v142 = vld [vmem:[#allocation2 + $0x2e8] sm:$0xff]
    %v143 = vld [vmem:[#allocation2 + $0x2f0] sm:$0xff]
    %v144 = vld [vmem:[#allocation2 + $0x2f8] sm:$0xff]
    %v145 = vld [vmem:[#allocation2 + $0x300] sm:$0xff]
    %v146 = vld [vmem:[#allocation2 + $0x308] sm:$0xff]
    %v147 = vld [vmem:[#allocation2 + $0x310] sm:$0xff]
    %v148 = vld [vmem:[#allocation2 + $0x318] sm:$0xff]
    %v149 = vld [vmem:[#allocation2 + $0x320] sm:$0xff]
    %v150 = vld [vmem:[#allocation2 + $0x328] sm:$0xff]
    %v151 = vld [vmem:[#allocation2 + $0x330] sm:$0xff]
    %v152 = vld [vmem:[#allocation2 + $0x338] sm:$0xff]
    %v153 = vld [vmem:[#allocation2 + $0x340] sm:$0xff]
    %v154 = vld [vmem:[#allocation2 + $0x348] sm:$0xff]
    %v155 = vld [vmem:[#allocation2 + $0x350] sm:$0xff]
    %v156 = vld [vmem:[#allocation2 + $0x358] sm:$0xff]
    %v157 = vld [vmem:[#allocation2 + $0x360] sm:$0xff]
    %v158 = vld [vmem:[#allocation2 + $0x368] sm:$0xff]
    %v159 = vld [vmem:[#allocation2 + $0x370] sm:$0xff]
    %v160 = vld [vmem:[#allocation2 + $0x378] sm:$0xff]
    %v161 = vld [vmem:[#allocation2 + $0x380] sm:$0xff]
    %v162 = vld [vmem:[#allocation2 + $0x388] sm:$0xff]
    %v163 = vld [vmem:[#allocation2 + $0x390] sm:$0xff]
    %v164 = vld [vmem:[#allocation2 + $0x398] sm:$0xff]
    %v165 = vld [vmem:[#allocation2 + $0x3a0] sm:$0xff]
    %v166 = vld [vmem:[#allocation2 + $0x3a8] sm:$0xff]
    %v167 = vld [vmem:[#allocation2 + $0x3b0] sm:$0xff]
    %v168 = vld [vmem:[#allocation2 + $0x3b8] sm:$0xff]
    %v169 = vld [vmem:[#allocation2 + $0x3c0] sm:$0xff]
    %v170 = vld [vmem:[#allocation2 + $0x3c8] sm:$0xff]
    %v171 = vld [vmem:[#allocation2 + $0x3d0] sm:$0xff]
    %v172 = vld [vmem:[#allocation2 + $0x3d8] sm:$0xff]
    %v173 = vld [vmem:[#allocation2 + $0x3e0] sm:$0xff]
    %v174 = vld [vmem:[#allocation2 + $0x3e8] sm:$0xff]
    %v175 = vld [vmem:[#allocation2 + $0x3f0] sm:$0xff]
    %v176 = vld [vmem:[#allocation2 + $0x3f8] sm:$0xff]
    %v177 = vld [vmem:[#allocation2 + $0x400] sm:$0xff]
    %v178 = vld [vmem:[#allocation2 + $0x408] sm:$0xff]
    %v179 = vld [vmem:[#allocation2 + $0x410] sm:$0xff]
    %v180 = vld [vmem:[#allocation2 + $0x418] sm:$0xff]
    %v181 = vld [vmem:[#allocation2 + $0x420] sm:$0xff]
    %v182 = vld [vmem:[#allocation2 + $0x428] sm:$0xff]
    %v183 = vld [vmem:[#allocation2 + $0x430] sm:$0xff]
    %v184 = vld [vmem:[#allocation2 + $0x438] sm:$0xff]
    %v185 = vld [vmem:[#allocation2 + $0x440] sm:$0xff]
    %v186 = vld [vmem:[#allocation2 + $0x448] sm:$0xff]
    %v187 = vld [vmem:[#allocation2 + $0x450] sm:$0xff]
    %v188 = vld [vmem:[#allocation2 + $0x458] sm:$0xff]
    %v189 = vld [vmem:[#allocation2 + $0x460] sm:$0xff]
    %v190 = vld [vmem:[#allocation2 + $0x468] sm:$0xff]
    %v191 = vld [vmem:[#allocation2 + $0x470] sm:$0xff]
    %v192 = vld [vmem:[#allocation2 + $0x478] sm:$0xff]
    %v193 = vld [vmem:[#allocation2 + $0x480] sm:$0xff]
    %v194 = vld [vmem:[#allocation2 + $0x488] sm:$0xff]
    %v195 = vld [vmem:[#allocation2 + $0x490] sm:$0xff]
    %v196 = vld [vmem:[#allocation2 + $0x498] sm:$0xff]
    %v197 = vld [vmem:[#allocation2 + $0x4a0] sm:$0xff]
    %v198 = vld [vmem:[#allocation2 + $0x4a8] sm:$0xff]
    %v199 = vld [vmem:[#allocation2 + $0x4b0] sm:$0xff]
    %v200 = vld [vmem:[#allocation2 + $0x4b8] sm:$0xff]
    %v201 = vld [vmem:[#allocation2 + $0x4c0] sm:$0xff]
    %v202 = vld [vmem:[#allocation2 + $0x4c8] sm:$0xff]
    %v203 = vld [vmem:[#allocation2 + $0x4d0] sm:$0xff]
    %v204 = vld [vmem:[#allocation2 + $0x4d8] sm:$0xff]
    %v205 = vld [vmem:[#allocation2 + $0x4e0] sm:$0xff]
    %v206 = vld [vmem:[#allocation2 + $0x4e8] sm:$0xff]
    %v207 = vld [vmem:[#allocation2 + $0x4f0] sm:$0xff]
    %v208 = vld [vmem:[#allocation2 + $0x4f8] sm:$0xff]
    %v209 = vld [vmem:[#allocation2 + $0x500] sm:$0xff]
    %v210 = vld [vmem:[#allocation2 + $0x508] sm:$0xff]
    %v211 = vld [vmem:[#allocation2 + $0x510] sm:$0xff]
    %v212 = vld [vmem:[#allocation2 + $0x518] sm:$0xff]
    %v213 = vld [vmem:[#allocation2 + $0x520] sm:$0xff]
    %v214 = vld [vmem:[#allocation2 + $0x528] sm:$0xff]
    %v215 = vld [vmem:[#allocation2 + $0x530] sm:$0xff]
    %v216 = vld [vmem:[#allocation2 + $0x538] sm:$0xff]
    %v217 = vld [vmem:[#allocation2 + $0x540] sm:$0xff]
    %v218 = vld [vmem:[#allocation2 + $0x548] sm:$0xff]
    %v219 = vld [vmem:[#allocation2 + $0x550] sm:$0xff]
    %v220 = vld [vmem:[#allocation2 + $0x558] sm:$0xff]
    %v221 = vld [vmem:[#allocation2 + $0x560] sm:$0xff]
    %v222 = vld [vmem:[#allocation2 + $0x568] sm:$0xff]
    %v223 = vld [vmem:[#allocation2 + $0x570] sm:$0xff]
    %v224 = vld [vmem:[#allocation2 + $0x578] sm:$0xff]
    %v225 = vld [vmem:[#allocation2 + $0x580] sm:$0xff]
    %v226 = vld [vmem:[#allocation2 + $0x588] sm:$0xff]
    %v227 = vld [vmem:[#allocation2 + $0x590] sm:$0xff]
    %v228 = vld [vmem:[#allocation2 + $0x598] sm:$0xff]
    %v229 = vld [vmem:[#allocation2 + $0x5a0] sm:$0xff]
    %v230 = vld [vmem:[#allocation2 + $0x5a8] sm:$0xff]
    %v231 = vld [vmem:[#allocation2 + $0x5b0] sm:$0xff]
    %v232 = vld [vmem:[#allocation2 + $0x5b8] sm:$0xff]
    %v233 = vld [vmem:[#allocation2 + $0x5c0] sm:$0xff]
    %v234 = vld [vmem:[#allocation2 + $0x5c8] sm:$0xff]
    %v235 = vld [vmem:[#allocation2 + $0x5d0] sm:$0xff]
    %v236 = vld [vmem:[#allocation2 + $0x5d8] sm:$0xff]
    %v237 = vld [vmem:[#allocation2 + $0x5e0] sm:$0xff]
    %v238 = vld [vmem:[#allocation2 + $0x5e8] sm:$0xff]
    %v239 = vld [vmem:[#allocation2 + $0x5f0] sm:$0xff]
    %v240 = vld [vmem:[#allocation2 + $0x5f8] sm:$0xff]
    %v241 = vld [vmem:[#allocation2 + $0x600] sm:$0xff]
    %v242 = vld [vmem:[#allocation2 + $0x608] sm:$0xff]
    %v243 = vld [vmem:[#allocation2 + $0x610] sm:$0xff]
    %v244 = vld [vmem:[#allocation2 + $0x618] sm:$0xff]
    %v245 = vld [vmem:[#allocation2 + $0x620] sm:$0xff]
    %v246 = vld [vmem:[#allocation2 + $0x628] sm:$0xff]
    %v247 = vld [vmem:[#allocation2 + $0x630] sm:$0xff]
    %v248 = vld [vmem:[#allocation2 + $0x638] sm:$0xff]
    %v249 = vld [vmem:[#allocation2 + $0x640] sm:$0xff]
    %v250 = vld [vmem:[#allocation2 + $0x648] sm:$0xff]
    %v251 = vld [vmem:[#allocation2 + $0x650] sm:$0xff]
    %v252 = vld [vmem:[#allocation2 + $0x658] sm:$0xff]
    %v253 = vld [vmem:[#allocation2 + $0x660] sm:$0xff]
    %v254 = vld [vmem:[#allocation2 + $0x668] sm:$0xff]
    %v255 = vld [vmem:[#allocation2 + $0x670] sm:$0xff]
    %v256 = vld [vmem:[#allocation2 + $0x678] sm:$0xff]
    %v257 = vld [vmem:[#allocation2 + $0x680] sm:$0xff]
    %v258 = vld [vmem:[#allocation2 + $0x688] sm:$0xff]
    %v259 = vld [vmem:[#allocation2 + $0x690] sm:$0xff]
    %v260 = vld [vmem:[#allocation2 + $0x698] sm:$0xff]
    %v261 = vld [vmem:[#allocation2 + $0x6a0] sm:$0xff]
    %v262 = vld [vmem:[#allocation2 + $0x6a8] sm:$0xff]
    %v263 = vld [vmem:[#allocation2 + $0x6b0] sm:$0xff]
    %v264 = vld [vmem:[#allocation2 + $0x6b8] sm:$0xff]
    %v265 = vld [vmem:[#allocation2 + $0x6c0] sm:$0xff]
    %v266 = vld [vmem:[#allocation2 + $0x6c8] sm:$0xff]
    %v267 = vld [vmem:[#allocation2 + $0x6d0] sm:$0xff]
    %v268 = vld [vmem:[#allocation2 + $0x6d8] sm:$0xff]
    %v269 = vld [vmem:[#allocation2 + $0x6e0] sm:$0xff]
    %v270 = vld [vmem:[#allocation2 + $0x6e8] sm:$0xff]
    %v271 = vld [vmem:[#allocation2 + $0x6f0] sm:$0xff]
    %v272 = vld [vmem:[#allocation2 + $0x6f8] sm:$0xff]
    %v273 = vld [vmem:[#allocation2 + $0x700] sm:$0xff]
    %v274 = vld [vmem:[#allocation2 + $0x708] sm:$0xff]
    %v275 = vld [vmem:[#allocation2 + $0x710] sm:$0xff]
    %v276 = vld [vmem:[#allocation2 + $0x718] sm:$0xff]
    %v277 = vld [vmem:[#allocation2 + $0x720] sm:$0xff]
    %v278 = vld [vmem:[#allocation2 + $0x728] sm:$0xff]
    %v279 = vld [vmem:[#allocation2 + $0x730] sm:$0xff]
    %v280 = vld [vmem:[#allocation2 + $0x738] sm:$0xff]
    %v281 = vld [vmem:[#allocation2 + $0x740] sm:$0xff]
    %v282 = vld [vmem:[#allocation2 + $0x748] sm:$0xff]
    %v283 = vld [vmem:[#allocation2 + $0x750] sm:$0xff]
    %v284 = vld [vmem:[#allocation2 + $0x758] sm:$0xff]
    %v285 = vld [vmem:[#allocation2 + $0x760] sm:$0xff]
    %v286 = vld [vmem:[#allocation2 + $0x768] sm:$0xff]
    %v287 = vld [vmem:[#allocation2 + $0x770] sm:$0xff]
    %v288 = vld [vmem:[#allocation2 + $0x778] sm:$0xff]
    %v289 = vld [vmem:[#allocation2 + $0x780] sm:$0xff]
    %v290 = vld [vmem:[#allocation2 + $0x788] sm:$0xff]
    %v291 = vld [vmem:[#allocation2 + $0x790] sm:$0xff]
    %v292 = vld [vmem:[#allocation2 + $0x798] sm:$0xff]
    %v293 = vld [vmem:[#allocation2 + $0x7a0] sm:$0xff]
    %v294 = vld [vmem:[#allocation2 + $0x7a8] sm:$0xff]
    %v295 = vld [vmem:[#allocation2 + $0x7b0] sm:$0xff]
    %v296 = vld [vmem:[#allocation2 + $0x7b8] sm:$0xff]
    %v297 = vld [vmem:[#allocation2 + $0x7c0] sm:$0xff]
    %v298 = vld [vmem:[#allocation2 + $0x7c8] sm:$0xff]
    %v299 = vld [vmem:[#allocation2 + $0x7d0] sm:$0xff]
    %v300 = vld [vmem:[#allocation2 + $0x7d8] sm:$0xff]
    %v301 = vld [vmem:[#allocation2 + $0x7e0] sm:$0xff]
    %v302 = vld [vmem:[#allocation2 + $0x7e8] sm:$0xff]
    %v303 = vld [vmem:[#allocation2 + $0x7f0] sm:$0xff]
    %v304 = vld [vmem:[#allocation2 + $0x7f8] sm:$0xff]
    %v305 = vld [vmem:[%s2] sm:$0x3]
    %v307 = vlaneseq
    %v308 = vshrl.u32 %v307, 7
    %v309 = vsub.s32 0, %v308
    %v310 = vrot.slane %v305, %v309
    %v311 = vlaneseq
    %v312 = vshrl.u32 %v311, 7
    %v313 = vsub.s32 1, %v312
    %v314 = vrot.slane %v305, %v313
    %317 = vmatprep.subr.mxu0 %v80
    %318 = vmatpush1.msra.mxu0 %v79
    %319 = vmatprep.subr.mxu0 %v78
    %320 = vmatpush1.msra.mxu0 %v77
    %321 = vmatprep.subr.mxu0 %v76
    %322 = vmatpush1.msra.mxu0 %v75
    %323 = vmatprep.subr.mxu0 %v74
    %324 = vmatpush1.msra.mxu0 %v73
    %325 = vmatprep.subr.mxu0 %v72
    %326 = vmatpush1.msra.mxu0 %v71
    %327 = vmatprep.subr.mxu0 %v70
    %328 = vmatpush1.msra.mxu0 %v69
    %329 = vmatprep.subr.mxu0 %v68
    %330 = vmatpush1.msra.mxu0 %v67
    %331 = vmatprep.subr.mxu0 %v66
    %332 = vmatpush1.msra.mxu0 %v65
    %333 = vmatprep.subr.mxu0 %v64
    %334 = vmatpush1.msra.mxu0 %v63
    %335 = vmatprep.subr.mxu0 %v62
    %336 = vmatpush1.msra.mxu0 %v61
    %337 = vmatprep.subr.mxu0 %v60
    %338 = vmatpush1.msra.mxu0 %v59
    %339 = vmatprep.subr.mxu0 %v58
    %340 = vmatpush1.msra.mxu0 %v57
    %341 = vmatprep.subr.mxu0 %v56
    %342 = vmatpush1.msra.mxu0 %v55
    %343 = vmatprep.subr.mxu0 %v54
    %344 = vmatpush1.msra.mxu0 %v53
    %345 = vmatprep.subr.mxu0 %v52
    %346 = vmatpush1.msra.mxu0 %v51
    %347 = vmatprep.subr.mxu0 %v50
    %348 = vmatpush1.msra.mxu0 %v49
    %349 = vmatprep.subr.mxu0 %v112
    %350 = vmatpush2.msra.mxu0 %v111
    %351 = vmatprep.subr.mxu0 %v110
    %352 = vmatpush2.msra.mxu0 %v109
    %353 = vmatprep.subr.mxu0 %v108
    %354 = vmatpush2.msra.mxu0 %v107
    %355 = vmatprep.subr.mxu0 %v106
    %356 = vmatpush2.msra.mxu0 %v105
    %357 = vmatprep.subr.mxu0 %v104
    %358 = vmatpush2.msra.mxu0 %v103
    %359 = vmatprep.subr.mxu0 %v102
    %360 = vmatpush2.msra.mxu0 %v101
    %361 = vmatprep.subr.mxu0 %v100
    %362 = vmatpush2.msra.mxu0 %v99
    %363 = vmatprep.subr.mxu0 %v98
    %364 = vmatpush2.msra.mxu0 %v97
    %365 = vmatprep.subr.mxu0 %v96
    %366 = vmatpush2.msra.mxu0 %v95
    %367 = vmatprep.subr.mxu0 %v94
    %368 = vmatpush2.msra.mxu0 %v93
    %369 = vmatprep.subr.mxu0 %v92
    %370 = vmatpush2.msra.mxu0 %v91
    %371 = vmatprep.subr.mxu0 %v90
    %372 = vmatpush2.msra.mxu0 %v89
    %373 = vmatprep.subr.mxu0 %v88
    %374 = vmatpush2.msra.mxu0 %v87
    %375 = vmatprep.subr.mxu0 %v86
    %376 = vmatpush2.msra.mxu0 %v85
    %377 = vmatprep.subr.mxu0 %v84
    %378 = vmatpush2.msra.mxu0 %v83
    %379 = vmatprep.subr.mxu0 %v82
    %380 = vmatpush2.msra.mxu0 %v81
    %381 = vmatprep.mubr.f32.mxu0 %v42
    %382 = vmatmul.mubr.f32.gmra.mxu0 %v41
    %v383 = vpop.f32.mrf.mxu0
    %v384 = vadd.f32 %v310, %v383
    %v385 = vpop.f32.mrf.mxu0
    %v386 = vadd.f32 %v314, %v385
    %387 = vdwg.mxu0
    %388 = vmatprep.subr.mxu0 %v144
    %389 = vmatpush1.msra.mxu0 %v143
    %390 = vmatprep.subr.mxu0 %v142
    %391 = vmatpush1.msra.mxu0 %v141
    %392 = vmatprep.subr.mxu0 %v140
    %393 = vmatpush1.msra.mxu0 %v139
    %394 = vmatprep.subr.mxu0 %v138
    %395 = vmatpush1.msra.mxu0 %v137
    %396 = vmatprep.subr.mxu0 %v136
    %397 = vmatpush1.msra.mxu0 %v135
    %398 = vmatprep.subr.mxu0 %v134
    %399 = vmatpush1.msra.mxu0 %v133
    %400 = vmatprep.subr.mxu0 %v132
    %401 = vmatpush1.msra.mxu0 %v131
    %402 = vmatprep.subr.mxu0 %v130
    %403 = vmatpush1.msra.mxu0 %v129
    %404 = vmatprep.subr.mxu0 %v128
    %405 = vmatpush1.msra.mxu0 %v127
    %406 = vmatprep.subr.mxu0 %v126
    %407 = vmatpush1.msra.mxu0 %v125
    %408 = vmatprep.subr.mxu0 %v124
    %409 = vmatpush1.msra.mxu0 %v123
    %410 = vmatprep.subr.mxu0 %v122
    %411 = vmatpush1.msra.mxu0 %v121
    %412 = vmatprep.subr.mxu0 %v120
    %413 = vmatpush1.msra.mxu0 %v119
    %414 = vmatprep.subr.mxu0 %v118
    %415 = vmatpush1.msra.mxu0 %v117
    %416 = vmatprep.subr.mxu0 %v116
    %417 = vmatpush1.msra.mxu0 %v115
    %418 = vmatprep.subr.mxu0 %v114
    %419 = vmatpush1.msra.mxu0 %v113
    %420 = vmatprep.subr.mxu0 %v176
    %421 = vmatpush2.msra.mxu0 %v175
    %422 = vmatprep.subr.mxu0 %v174
    %423 = vmatpush2.msra.mxu0 %v173
    %424 = vmatprep.subr.mxu0 %v172
    %425 = vmatpush2.msra.mxu0 %v171
    %426 = vmatprep.subr.mxu0 %v170
    %427 = vmatpush2.msra.mxu0 %v169
    %428 = vmatprep.subr.mxu0 %v168
    %429 = vmatpush2.msra.mxu0 %v167
    %430 = vmatprep.subr.mxu0 %v166
    %431 = vmatpush2.msra.mxu0 %v165
    %432 = vmatprep.subr.mxu0 %v164
    %433 = vmatpush2.msra.mxu0 %v163
    %434 = vmatprep.subr.mxu0 %v162
    %435 = vmatpush2.msra.mxu0 %v161
    %436 = vmatprep.subr.mxu0 %v160
    %437 = vmatpush2.msra.mxu0 %v159
    %438 = vmatprep.subr.mxu0 %v158
    %439 = vmatpush2.msra.mxu0 %v157
    %440 = vmatprep.subr.mxu0 %v156
    %441 = vmatpush2.msra.mxu0 %v155
    %442 = vmatprep.subr.mxu0 %v154
    %443 = vmatpush2.msra.mxu0 %v153
    %444 = vmatprep.subr.mxu0 %v152
    %445 = vmatpush2.msra.mxu0 %v151
    %446 = vmatprep.subr.mxu0 %v150
    %447 = vmatpush2.msra.mxu0 %v149
    %448 = vmatprep.subr.mxu0 %v148
    %449 = vmatpush2.msra.mxu0 %v147
    %450 = vmatprep.subr.mxu0 %v146
    %451 = vmatpush2.msra.mxu0 %v145
    %452 = vmatprep.mubr.f32.mxu0 %v44
    %453 = vmatmul.mubr.f32.gmra.mxu0 %v43
    %v454 = vpop.f32.mrf.mxu0
    %v455 = vadd.f32 %v384, %v454
    %v456 = vpop.f32.mrf.mxu0
    %v457 = vadd.f32 %v386, %v456
    %458 = vdwg.mxu0
    %459 = vmatprep.subr.mxu0 %v208
    %460 = vmatpush1.msra.mxu0 %v207
    %461 = vmatprep.subr.mxu0 %v206
    %462 = vmatpush1.msra.mxu0 %v205
    %463 = vmatprep.subr.mxu0 %v204
    %464 = vmatpush1.msra.mxu0 %v203
    %465 = vmatprep.subr.mxu0 %v202
    %466 = vmatpush1.msra.mxu0 %v201
    %467 = vmatprep.subr.mxu0 %v200
    %468 = vmatpush1.msra.mxu0 %v199
    %469 = vmatprep.subr.mxu0 %v198
    %470 = vmatpush1.msra.mxu0 %v197
    %471 = vmatprep.subr.mxu0 %v196
    %472 = vmatpush1.msra.mxu0 %v195
    %473 = vmatprep.subr.mxu0 %v194
    %474 = vmatpush1.msra.mxu0 %v193
    %475 = vmatprep.subr.mxu0 %v192
    %476 = vmatpush1.msra.mxu0 %v191
    %477 = vmatprep.subr.mxu0 %v190
    %478 = vmatpush1.msra.mxu0 %v189
    %479 = vmatprep.subr.mxu0 %v188
    %480 = vmatpush1.msra.mxu0 %v187
    %481 = vmatprep.subr.mxu0 %v186
    %482 = vmatpush1.msra.mxu0 %v185
    %483 = vmatprep.subr.mxu0 %v184
    %484 = vmatpush1.msra.mxu0 %v183
    %485 = vmatprep.subr.mxu0 %v182
    %486 = vmatpush1.msra.mxu0 %v181
    %487 = vmatprep.subr.mxu0 %v180
    %488 = vmatpush1.msra.mxu0 %v179
    %489 = vmatprep.subr.mxu0 %v178
    %490 = vmatpush1.msra.mxu0 %v177
    %491 = vmatprep.subr.mxu0 %v240
    %492 = vmatpush2.msra.mxu0 %v239
    %493 = vmatprep.subr.mxu0 %v238
    %494 = vmatpush2.msra.mxu0 %v237
    %495 = vmatprep.subr.mxu0 %v236
    %496 = vmatpush2.msra.mxu0 %v235
    %497 = vmatprep.subr.mxu0 %v234
    %498 = vmatpush2.msra.mxu0 %v233
    %499 = vmatprep.subr.mxu0 %v232
    %500 = vmatpush2.msra.mxu0 %v231
    %501 = vmatprep.subr.mxu0 %v230
    %502 = vmatpush2.msra.mxu0 %v229
    %503 = vmatprep.subr.mxu0 %v228
    %504 = vmatpush2.msra.mxu0 %v227
    %505 = vmatprep.subr.mxu0 %v226
    %506 = vmatpush2.msra.mxu0 %v225
    %507 = vmatprep.subr.mxu0 %v224
    %508 = vmatpush2.msra.mxu0 %v223
    %509 = vmatprep.subr.mxu0 %v222
    %510 = vmatpush2.msra.mxu0 %v221
    %511 = vmatprep.subr.mxu0 %v220
    %512 = vmatpush2.msra.mxu0 %v219
    %513 = vmatprep.subr.mxu0 %v218
    %514 = vmatpush2.msra.mxu0 %v217
    %515 = vmatprep.subr.mxu0 %v216
    %516 = vmatpush2.msra.mxu0 %v215
    %517 = vmatprep.subr.mxu0 %v214
    %518 = vmatpush2.msra.mxu0 %v213
    %519 = vmatprep.subr.mxu0 %v212
    %520 = vmatpush2.msra.mxu0 %v211
    %521 = vmatprep.subr.mxu0 %v210
    %522 = vmatpush2.msra.mxu0 %v209
    %523 = vmatprep.mubr.f32.mxu0 %v46
    %524 = vmatmul.mubr.f32.gmra.mxu0 %v45
    %v525 = vpop.f32.mrf.mxu0
    %v526 = vadd.f32 %v455, %v525
    %v527 = vpop.f32.mrf.mxu0
    %v528 = vadd.f32 %v457, %v527
    %529 = vdwg.mxu0
    %530 = vmatprep.subr.mxu0 %v272
    %531 = vmatpush1.msra.mxu0 %v271
    %532 = vmatprep.subr.mxu0 %v270
    %533 = vmatpush1.msra.mxu0 %v269
    %534 = vmatprep.subr.mxu0 %v268
    %535 = vmatpush1.msra.mxu0 %v267
    %536 = vmatprep.subr.mxu0 %v266
    %537 = vmatpush1.msra.mxu0 %v265
    %538 = vmatprep.subr.mxu0 %v264
    %539 = vmatpush1.msra.mxu0 %v263
    %540 = vmatprep.subr.mxu0 %v262
    %541 = vmatpush1.msra.mxu0 %v261
    %542 = vmatprep.subr.mxu0 %v260
    %543 = vmatpush1.msra.mxu0 %v259
    %544 = vmatprep.subr.mxu0 %v258
    %545 = vmatpush1.msra.mxu0 %v257
    %546 = vmatprep.subr.mxu0 %v256
    %547 = vmatpush1.msra.mxu0 %v255
    %548 = vmatprep.subr.mxu0 %v254
    %549 = vmatpush1.msra.mxu0 %v253
    %550 = vmatprep.subr.mxu0 %v252
    %551 = vmatpush1.msra.mxu0 %v251
    %552 = vmatprep.subr.mxu0 %v250
    %553 = vmatpush1.msra.mxu0 %v249
    %554 = vmatprep.subr.mxu0 %v248
    %555 = vmatpush1.msra.mxu0 %v247
    %556 = vmatprep.subr.mxu0 %v246
    %557 = vmatpush1.msra.mxu0 %v245
    %558 = vmatprep.subr.mxu0 %v244
    %559 = vmatpush1.msra.mxu0 %v243
    %560 = vmatprep.subr.mxu0 %v242
    %561 = vmatpush1.msra.mxu0 %v241
    %562 = vmatprep.subr.mxu0 %v304
    %563 = vmatpush2.msra.mxu0 %v303
    %564 = vmatprep.subr.mxu0 %v302
    %565 = vmatpush2.msra.mxu0 %v301
    %566 = vmatprep.subr.mxu0 %v300
    %567 = vmatpush2.msra.mxu0 %v299
    %568 = vmatprep.subr.mxu0 %v298
    %569 = vmatpush2.msra.mxu0 %v297
    %570 = vmatprep.subr.mxu0 %v296
    %571 = vmatpush2.msra.mxu0 %v295
    %572 = vmatprep.subr.mxu0 %v294
    %573 = vmatpush2.msra.mxu0 %v293
    %574 = vmatprep.subr.mxu0 %v292
    %575 = vmatpush2.msra.mxu0 %v291
    %576 = vmatprep.subr.mxu0 %v290
    %577 = vmatpush2.msra.mxu0 %v289
    %578 = vmatprep.subr.mxu0 %v288
    %579 = vmatpush2.msra.mxu0 %v287
    %580 = vmatprep.subr.mxu0 %v286
    %581 = vmatpush2.msra.mxu0 %v285
    %582 = vmatprep.subr.mxu0 %v284
    %583 = vmatpush2.msra.mxu0 %v283
    %584 = vmatprep.subr.mxu0 %v282
    %585 = vmatpush2.msra.mxu0 %v281
    %586 = vmatprep.subr.mxu0 %v280
    %587 = vmatpush2.msra.mxu0 %v279
    %588 = vmatprep.subr.mxu0 %v278
    %589 = vmatpush2.msra.mxu0 %v277
    %590 = vmatprep.subr.mxu0 %v276
    %591 = vmatpush2.msra.mxu0 %v275
    %592 = vmatprep.subr.mxu0 %v274
    %593 = vmatpush2.msra.mxu0 %v273
    %594 = vmatprep.mubr.f32.mxu0 %v48
    %595 = vmatmul.mubr.f32.gmra.mxu0 %v47
    %v596 = vpop.f32.mrf.mxu0
    %v597 = vadd.f32 %v526, %v596
    %v598 = vpop.f32.mrf.mxu0
    %v599 = vadd.f32 %v528, %v598
    %600 = vdwg.mxu0
    %v601 = vmax.f32 %v597, 0.0
    %v602 = vmax.f32 %v599, 0.0
    %v603 = vld [vmem:[%s3] sm:$0xff]
    %v604 = vld [vmem:[%s3 + $0x8] sm:$0xff]
    %v605 = vld [vmem:[%s3 + $0x10] sm:$0xff]
    %v606 = vld [vmem:[%s3 + $0x18] sm:$0xff]
    %v607 = vld [vmem:[%s3 + $0x20] sm:$0xff]
    %v608 = vld [vmem:[%s3 + $0x28] sm:$0xff]
    %v609 = vld [vmem:[%s3 + $0x30] sm:$0xff]
    %v610 = vld [vmem:[%s3 + $0x38] sm:$0xff]
    %v611 = vld [vmem:[%s3 + $0x40] sm:$0xff]
    %v612 = vld [vmem:[%s3 + $0x48] sm:$0xff]
    %v613 = vld [vmem:[%s3 + $0x50] sm:$0xff]
    %v614 = vld [vmem:[%s3 + $0x58] sm:$0xff]
    %v615 = vld [vmem:[%s3 + $0x60] sm:$0xff]
    %v616 = vld [vmem:[%s3 + $0x68] sm:$0xff]
    %v617 = vld [vmem:[%s3 + $0x70] sm:$0xff]
    %v618 = vld [vmem:[%s3 + $0x78] sm:$0xff]
    %v619 = vld [vmem:[%s3 + $0x80] sm:$0xff]
    %v620 = vld [vmem:[%s3 + $0x88] sm:$0xff]
    %v621 = vld [vmem:[%s3 + $0x90] sm:$0xff]
    %v622 = vld [vmem:[%s3 + $0x98] sm:$0xff]
    %v623 = vld [vmem:[%s3 + $0xa0] sm:$0xff]
    %v624 = vld [vmem:[%s3 + $0xa8] sm:$0xff]
    %v625 = vld [vmem:[%s3 + $0xb0] sm:$0xff]
    %v626 = vld [vmem:[%s3 + $0xb8] sm:$0xff]
    %v627 = vld [vmem:[%s3 + $0xc0] sm:$0xff]
    %v628 = vld [vmem:[%s3 + $0xc8] sm:$0xff]
    %v629 = vld [vmem:[%s3 + $0xd0] sm:$0xff]
    %v630 = vld [vmem:[%s3 + $0xd8] sm:$0xff]
    %v631 = vld [vmem:[%s3 + $0xe0] sm:$0xff]
    %v632 = vld [vmem:[%s3 + $0xe8] sm:$0xff]
    %v633 = vld [vmem:[%s3 + $0xf0] sm:$0xff]
    %v634 = vld [vmem:[%s3 + $0xf8] sm:$0xff]
    %v635 = vld [vmem:[%s3 + $0x100] sm:$0xff]
    %v636 = vld [vmem:[%s3 + $0x108] sm:$0xff]
    %v637 = vld [vmem:[%s3 + $0x110] sm:$0xff]
    %v638 = vld [vmem:[%s3 + $0x118] sm:$0xff]
    %v639 = vld [vmem:[%s3 + $0x120] sm:$0xff]
    %v640 = vld [vmem:[%s3 + $0x128] sm:$0xff]
    %v641 = vld [vmem:[%s3 + $0x130] sm:$0xff]
    %v642 = vld [vmem:[%s3 + $0x138] sm:$0xff]
    %v643 = vld [vmem:[%s3 + $0x140] sm:$0xff]
    %v644 = vld [vmem:[%s3 + $0x148] sm:$0xff]
    %v645 = vld [vmem:[%s3 + $0x150] sm:$0xff]
    %v646 = vld [vmem:[%s3 + $0x158] sm:$0xff]
    %v647 = vld [vmem:[%s3 + $0x160] sm:$0xff]
    %v648 = vld [vmem:[%s3 + $0x168] sm:$0xff]
    %v649 = vld [vmem:[%s3 + $0x170] sm:$0xff]
    %v650 = vld [vmem:[%s3 + $0x178] sm:$0xff]
    %v651 = vld [vmem:[%s3 + $0x180] sm:$0xff]
    %v652 = vld [vmem:[%s3 + $0x188] sm:$0xff]
    %v653 = vld [vmem:[%s3 + $0x190] sm:$0xff]
    %v654 = vld [vmem:[%s3 + $0x198] sm:$0xff]
    %v655 = vld [vmem:[%s3 + $0x1a0] sm:$0xff]
    %v656 = vld [vmem:[%s3 + $0x1a8] sm:$0xff]
    %v657 = vld [vmem:[%s3 + $0x1b0] sm:$0xff]
    %v658 = vld [vmem:[%s3 + $0x1b8] sm:$0xff]
    %v659 = vld [vmem:[%s3 + $0x1c0] sm:$0xff]
    %v660 = vld [vmem:[%s3 + $0x1c8] sm:$0xff]
    %v661 = vld [vmem:[%s3 + $0x1d0] sm:$0xff]
    %v662 = vld [vmem:[%s3 + $0x1d8] sm:$0xff]
    %v663 = vld [vmem:[%s3 + $0x1e0] sm:$0xff]
    %v664 = vld [vmem:[%s3 + $0x1e8] sm:$0xff]
    %v665 = vld [vmem:[%s3 + $0x1f0] sm:$0xff]
    %v666 = vld [vmem:[%s3 + $0x1f8] sm:$0xff]
    %v667 = vld [vmem:[%s4] sm:$0x3]
    %v669 = vlaneseq
    %v670 = vshrl.u32 %v669, 7
    %v671 = vsub.s32 0, %v670
    %v672 = vrot.slane %v667, %v671
    %v673 = vlaneseq
    %v674 = vshrl.u32 %v673, 7
    %v675 = vsub.s32 1, %v674
    %v676 = vrot.slane %v667, %v675
    %679 = vmatprep.subr.mxu0 %v634
    %680 = vmatpush1.msra.mxu0 %v633
    %681 = vmatprep.subr.mxu0 %v632
    %682 = vmatpush1.msra.mxu0 %v631
    %683 = vmatprep.subr.mxu0 %v630
    %684 = vmatpush1.msra.mxu0 %v629
    %685 = vmatprep.subr.mxu0 %v628
    %686 = vmatpush1.msra.mxu0 %v627
    %687 = vmatprep.subr.mxu0 %v626
    %688 = vmatpush1.msra.mxu0 %v625
    %689 = vmatprep.subr.mxu0 %v624
    %690 = vmatpush1.msra.mxu0 %v623
    %691 = vmatprep.subr.mxu0 %v622
    %692 = vmatpush1.msra.mxu0 %v621
    %693 = vmatprep.subr.mxu0 %v620
    %694 = vmatpush1.msra.mxu0 %v619
    %695 = vmatprep.subr.mxu0 %v618
    %696 = vmatpush1.msra.mxu0 %v617
    %697 = vmatprep.subr.mxu0 %v616
    %698 = vmatpush1.msra.mxu0 %v615
    %699 = vmatprep.subr.mxu0 %v614
    %700 = vmatpush1.msra.mxu0 %v613
    %701 = vmatprep.subr.mxu0 %v612
    %702 = vmatpush1.msra.mxu0 %v611
    %703 = vmatprep.subr.mxu0 %v610
    %704 = vmatpush1.msra.mxu0 %v609
    %705 = vmatprep.subr.mxu0 %v608
    %706 = vmatpush1.msra.mxu0 %v607
    %707 = vmatprep.subr.mxu0 %v606
    %708 = vmatpush1.msra.mxu0 %v605
    %709 = vmatprep.subr.mxu0 %v604
    %710 = vmatpush1.msra.mxu0 %v603
    %711 = vmatprep.subr.mxu0 %v666
    %712 = vmatpush2.msra.mxu0 %v665
    %713 = vmatprep.subr.mxu0 %v664
    %714 = vmatpush2.msra.mxu0 %v663
    %715 = vmatprep.subr.mxu0 %v662
    %716 = vmatpush2.msra.mxu0 %v661
    %717 = vmatprep.subr.mxu0 %v660
    %718 = vmatpush2.msra.mxu0 %v659
    %719 = vmatprep.subr.mxu0 %v658
    %720 = vmatpush2.msra.mxu0 %v657
    %721 = vmatprep.subr.mxu0 %v656
    %722 = vmatpush2.msra.mxu0 %v655
    %723 = vmatprep.subr.mxu0 %v654
    %724 = vmatpush2.msra.mxu0 %v653
    %725 = vmatprep.subr.mxu0 %v652
    %726 = vmatpush2.msra.mxu0 %v651
    %727 = vmatprep.subr.mxu0 %v650
    %728 = vmatpush2.msra.mxu0 %v649
    %729 = vmatprep.subr.mxu0 %v648
    %730 = vmatpush2.msra.mxu0 %v647
    %731 = vmatprep.subr.mxu0 %v646
    %732 = vmatpush2.msra.mxu0 %v645
    %733 = vmatprep.subr.mxu0 %v644
    %734 = vmatpush2.msra.mxu0 %v643
    %735 = vmatprep.subr.mxu0 %v642
    %736 = vmatpush2.msra.mxu0 %v641
    %737 = vmatprep.subr.mxu0 %v640
    %738 = vmatpush2.msra.mxu0 %v639
    %739 = vmatprep.subr.mxu0 %v638
    %740 = vmatpush2.msra.mxu0 %v637
    %741 = vmatprep.subr.mxu0 %v636
    %742 = vmatpush2.msra.mxu0 %v635
    %743 = vmatprep.mubr.f32.mxu0 %v602
    %744 = vmatmul.mubr.f32.gmra.mxu0 %v601
    %v745 = vpop.f32.mrf.mxu0
    %v746 = vadd.f32 %v672, %v745
    %v747 = vpop.f32.mrf.mxu0
    %v748 = vadd.f32 %v676, %v747
    %749 = vdwg.mxu0
    %v750 = vmax.f32 %v746, 0.0
    %v751 = vmax.f32 %v748, 0.0
    %v752 = vld [vmem:[%s5] sm:$0xff]
    %v753 = vld [vmem:[%s5 + $0x8] sm:$0xff]
    %v754 = vld [vmem:[%s5 + $0x10] sm:$0xff]
    %v755 = vld [vmem:[%s5 + $0x18] sm:$0xff]
    %v756 = vld [vmem:[%s5 + $0x20] sm:$0xff]
    %v757 = vld [vmem:[%s5 + $0x28] sm:$0xff]
    %v758 = vld [vmem:[%s5 + $0x30] sm:$0xff]
    %v759 = vld [vmem:[%s5 + $0x38] sm:$0xff]
    %v760 = vld [vmem:[%s5 + $0x40] sm:$0xff]
    %v761 = vld [vmem:[%s5 + $0x48] sm:$0xff]
    %v762 = vld [vmem:[%s5 + $0x50] sm:$0xff]
    %v763 = vld [vmem:[%s5 + $0x58] sm:$0xff]
    %v764 = vld [vmem:[%s5 + $0x60] sm:$0xff]
    %v765 = vld [vmem:[%s5 + $0x68] sm:$0xff]
    %v766 = vld [vmem:[%s5 + $0x70] sm:$0xff]
    %v767 = vld [vmem:[%s5 + $0x78] sm:$0xff]
    %v768 = vld [vmem:[%s5 + $0x80] sm:$0xff]
    %v769 = vld [vmem:[%s5 + $0x88] sm:$0xff]
    %v770 = vld [vmem:[%s5 + $0x90] sm:$0xff]
    %v771 = vld [vmem:[%s5 + $0x98] sm:$0xff]
    %v772 = vld [vmem:[%s5 + $0xa0] sm:$0xff]
    %v773 = vld [vmem:[%s5 + $0xa8] sm:$0xff]
    %v774 = vld [vmem:[%s5 + $0xb0] sm:$0xff]
    %v775 = vld [vmem:[%s5 + $0xb8] sm:$0xff]
    %v776 = vld [vmem:[%s5 + $0xc0] sm:$0xff]
    %v777 = vld [vmem:[%s5 + $0xc8] sm:$0xff]
    %v778 = vld [vmem:[%s5 + $0xd0] sm:$0xff]
    %v779 = vld [vmem:[%s5 + $0xd8] sm:$0xff]
    %v780 = vld [vmem:[%s5 + $0xe0] sm:$0xff]
    %v781 = vld [vmem:[%s5 + $0xe8] sm:$0xff]
    %v782 = vld [vmem:[%s5 + $0xf0] sm:$0xff]
    %v783 = vld [vmem:[%s5 + $0xf8] sm:$0xff]
    %v784 = vld [vmem:[%s6] sm:$0x1]
    %v786 = vlaneseq
    %v787 = vshrl.u32 %v786, 7
    %v788 = vsub.s32 0, %v787
    %v789 = vrot.slane %v784, %v788
    %791 = vmatprep.subr.mxu0 0.0
    %792 = vmatpush1.msra.mxu0 %v767
    %793 = vmatprep.subr.mxu0 0.0
    %794 = vmatpush1.msra.mxu0 %v766
    %795 = vmatprep.subr.mxu0 0.0
    %796 = vmatpush1.msra.mxu0 %v765
    %797 = vmatprep.subr.mxu0 0.0
    %798 = vmatpush1.msra.mxu0 %v764
    %799 = vmatprep.subr.mxu0 0.0
    %800 = vmatpush1.msra.mxu0 %v763
    %801 = vmatprep.subr.mxu0 0.0
    %802 = vmatpush1.msra.mxu0 %v762
    %803 = vmatprep.subr.mxu0 0.0
    %804 = vmatpush1.msra.mxu0 %v761
    %805 = vmatprep.subr.mxu0 0.0
    %806 = vmatpush1.msra.mxu0 %v760
    %807 = vmatprep.subr.mxu0 0.0
    %808 = vmatpush1.msra.mxu0 %v759
    %809 = vmatprep.subr.mxu0 0.0
    %810 = vmatpush1.msra.mxu0 %v758
    %811 = vmatprep.subr.mxu0 0.0
    %812 = vmatpush1.msra.mxu0 %v757
    %813 = vmatprep.subr.mxu0 0.0
    %814 = vmatpush1.msra.mxu0 %v756
    %815 = vmatprep.subr.mxu0 0.0
    %816 = vmatpush1.msra.mxu0 %v755
    %817 = vmatprep.subr.mxu0 0.0
    %818 = vmatpush1.msra.mxu0 %v754
    %819 = vmatprep.subr.mxu0 0.0
    %820 = vmatpush1.msra.mxu0 %v753
    %821 = vmatprep.subr.mxu0 0.0
    %822 = vmatpush1.msra.mxu0 %v752
    %823 = vmatprep.subr.mxu0 0.0
    %824 = vmatpush2.msra.mxu0 %v783
    %825 = vmatprep.subr.mxu0 0.0
    %826 = vmatpush2.msra.mxu0 %v782
    %827 = vmatprep.subr.mxu0 0.0
    %828 = vmatpush2.msra.mxu0 %v781
    %829 = vmatprep.subr.mxu0 0.0
    %830 = vmatpush2.msra.mxu0 %v780
    %831 = vmatprep.subr.mxu0 0.0
    %832 = vmatpush2.msra.mxu0 %v779
    %833 = vmatprep.subr.mxu0 0.0
    %834 = vmatpush2.msra.mxu0 %v778
    %835 = vmatprep.subr.mxu0 0.0
    %836 = vmatpush2.msra.mxu0 %v777
    %837 = vmatprep.subr.mxu0 0.0
    %838 = vmatpush2.msra.mxu0 %v776
    %839 = vmatprep.subr.mxu0 0.0
    %840 = vmatpush2.msra.mxu0 %v775
    %841 = vmatprep.subr.mxu0 0.0
    %842 = vmatpush2.msra.mxu0 %v774
    %843 = vmatprep.subr.mxu0 0.0
    %844 = vmatpush2.msra.mxu0 %v773
    %845 = vmatprep.subr.mxu0 0.0
    %846 = vmatpush2.msra.mxu0 %v772
    %847 = vmatprep.subr.mxu0 0.0
    %848 = vmatpush2.msra.mxu0 %v771
    %849 = vmatprep.subr.mxu0 0.0
    %850 = vmatpush2.msra.mxu0 %v770
    %851 = vmatprep.subr.mxu0 0.0
    %852 = vmatpush2.msra.mxu0 %v769
    %853 = vmatprep.subr.mxu0 0.0
    %854 = vmatpush2.msra.mxu0 %v768
    %855 = vmatprep.mubr.f32.mxu0 %v751
    %856 = vmatmul.mubr.f32.gmra.mxu0 %v750
    %v857 = vpop.f32.mrf.mxu0
    %v858 = vadd.f32 %v789, %v857
    %v859 = vpop.f32.mrf.mxu0
    %860 = vdwg.mxu0
    %861 = vst [vmem:[#allocation5] sm:$0xff] %v858
    // Predicated region
    $region34: #{mlp_forward.1} parent=1 // pred_check
      _
    $region35: #{mlp_forward.1} parent=1 // pred_check_branch
      %863 = sbr.rel (0) target = $region37
    $region36: #{mlp_forward.1} parent=1 // pred_region
      %s865 = ssub.s32 128, 128
      %866 = vsyncadd [#allocation4], %s865
      %s868 = sshll.u32 [#allocation5], 4
      %s869 = int_to_ptr.vmem [resolvable:$true] %s868
      %871 = dma.vmem_to_hbm [thread:$0]  %s869, 128, %s7, [#allocation4]
    $region37: #{mlp_forward.1} parent=1 // pred_fallthru
      _
    // Predicated region
    $region38: #{mlp_forward.1} parent=1 // pred_check
      _
    $region39: #{mlp_forward.1} parent=1 // pred_check_branch
      %873 = sbr.rel (0) target = $region41
    $region40: #{mlp_forward.1} parent=1 // pred_region
      %874 = dma.done [#allocation4], 128
    $region41: #{mlp_forward.1} parent=1 // pred_fallthru
      _
    %875 = vsyncpa [#allocation3], 1
    %876 = vsyncpa [#allocation4], 1

</llo_original>
